<compile_context>
chip_gen: v5e
topology: v5e:2x2
jax: 0.10.0
libtpu: 0.0.40
codegen_flags: <defaults>
</compile_context>

<pallas_src>
import jax
import jax.numpy as jnp
from jax.experimental import pallas as pl
from jax.experimental.pallas import tpu as pltpu

LANE = 128          # padded lane width for every layer output
H1, H2 = 120, 84    # hidden sizes of the DQN MLP


def qnet_kernel(x_ref, w1_ref, w2_ref, w3_ref, b_ref, o_ref):
    """One (TB, obs_dim) tile of states -> one lane-dense (TB, 128) tile of Q-values."""
    # Cast x to the MXU operand dtype (bf16 by default) inside the kernel; the
    # HBM-side x stays f32 so no extra wrapper-side pass over x is needed.
    x = x_ref[...].astype(w1_ref.dtype)
    # Layer 1: padded W1 columns and padded b1 lanes are zero -> ReLU keeps them 0.
    h1 = jnp.dot(x, w1_ref[...], preferred_element_type=jnp.float32) + b_ref[0:1, :]
    h1 = jnp.maximum(h1, 0.0)
    # Layer 2
    h2 = jnp.dot(h1.astype(w2_ref.dtype), w2_ref[...],
                 preferred_element_type=jnp.float32) + b_ref[1:2, :]
    h2 = jnp.maximum(h2, 0.0)
    # Layer 3 (Q-values, lane-padded to 128; padding is sliced off in the wrapper)
    q = jnp.dot(h2.astype(w3_ref.dtype), w3_ref[...],
                preferred_element_type=jnp.float32) + b_ref[2:3, :]
    # bf16 store by default: halves the dominant HBM writeback stream while
    # keeping unmasked lane-dense vector stores.
    o_ref[...] = q.astype(o_ref.dtype)


def prepare_params(params, compute_dtype=jnp.bfloat16):
    """One-time parameter prep: transpose, zero-pad to 128 lanes, pack biases.

    Returns (prepared_arrays_dict, n_actions).  Matmul operands take
    `compute_dtype` (bf16 default: the MXU is bf16-native on v5e/v6e/v7x);
    biases stay f32 since accumulation is f32.
    """
    obs_dim = params["w1"].shape[1]
    n_actions = params["w3"].shape[0]

    def padded_w(w, rows, cols):
        wt = w.T.astype(compute_dtype)                     # (in, out)
        return jnp.zeros((rows, cols), compute_dtype).at[
            : wt.shape[0], : wt.shape[1]].set(wt)

    w1p = padded_w(params["w1"], obs_dim, LANE)            # (obs_dim, 128)
    w2p = padded_w(params["w2"], LANE, LANE)               # (128, 128)
    w3p = padded_w(params["w3"], LANE, LANE)               # (128, 128)

    bp = jnp.zeros((8, LANE), jnp.float32)                 # packed biases, f32
    bp = bp.at[0, :H1].set(params["b1"].astype(jnp.float32))
    bp = bp.at[1, :H2].set(params["b2"].astype(jnp.float32))
    bp = bp.at[2, :n_actions].set(params["b3"].astype(jnp.float32))

    return {"w1p": w1p, "w2p": w2p, "w3p": w3p, "bp": bp}, n_actions


def _cdiv(a, b):
    return -(-a // b)


def _round_up(n, m):
    return _cdiv(n, m) * m


def _choose_tile(B, block_b):
    """Padding-aware batch-tile size.

    Splits B into the fewest tiles of size <= block_b, balanced so padding is
    < 8 rows per tile.  For B >= 512 we guarantee at least two tiles so the
    "parallel" batch axis can be sharded across v7x's two TensorCores.
    """
    n_tiles = max(1, _cdiv(B, block_b))
    if n_tiles == 1 and B >= 512:
        n_tiles = 2
    return _round_up(_cdiv(B, n_tiles), 8)


def qnetwork_forward(x, prepared, n_actions, *, block_b=2048, out_dtype=None):
    """x: (B, obs_dim) f32.  prepared: output of prepare_params.

    Returns (B, n_actions) f32 Q-values (PyTorch forward semantics).
    """
    B, obs_dim = x.shape
    if out_dtype is None:
        out_dtype = prepared["w1p"].dtype   # bf16 out on the default bf16 path

    tb = _choose_tile(B, block_b)
    b_pad = _round_up(B, tb)
    if b_pad != B:
        x = jnp.pad(x, ((0, b_pad - B), (0, 0)))

    # NOTE: further ~8-32x writeback shrink is possible by packing
    # 128 // next_pow2(n_actions) batch rows per 128-lane output row, but the
    # kernel is already cheap; bf16 output is the chosen low-risk cut.
    out = pl.pallas_call(
        qnet_kernel,
        out_shape=jax.ShapeDtypeStruct((b_pad, LANE), out_dtype),
        grid=(b_pad // tb,),
        in_specs=[
            pl.BlockSpec((tb, obs_dim), lambda i: (i, 0)),          # streamed x tiles
            pl.BlockSpec(prepared["w1p"].shape, lambda i: (0, 0)),  # VMEM-resident
            pl.BlockSpec(prepared["w2p"].shape, lambda i: (0, 0)),  # VMEM-resident
            pl.BlockSpec(prepared["w3p"].shape, lambda i: (0, 0)),  # VMEM-resident
            pl.BlockSpec(prepared["bp"].shape, lambda i: (0, 0)),   # packed biases
        ],
        out_specs=pl.BlockSpec((tb, LANE), lambda i: (i, 0)),       # lane-dense store
        compiler_params=pltpu.CompilerParams(
            dimension_semantics=("parallel",),   # shard batch tiles across TCs (v7x)
        ),
    )(x, prepared["w1p"], prepared["w2p"], prepared["w3p"], prepared["bp"])

    return out[:B, :n_actions].astype(jnp.float32)


def init_params(key, obs_dim, n_actions):
    """Deterministic synthetic parameters with PyTorch nn.Linear shapes."""
    ks = jax.random.split(key, 6)

    def u(k, shape, fan_in):
        bound = 1.0 / jnp.sqrt(fan_in)
        return jax.random.uniform(k, shape, jnp.float32, -bound, bound)

    return {
        "w1": u(ks[0], (H1, obs_dim), obs_dim),
        "b1": u(ks[1], (H1,), obs_dim),
        "w2": u(ks[2], (H2, H1), H1),
        "b2": u(ks[3], (H2,), H1),
        "w3": u(ks[4], (n_actions, H2), H2),
        "b3": u(ks[5], (n_actions,), H2),
    }


def _reference(x, params):
    h1 = jnp.maximum(x @ params["w1"].T + params["b1"], 0.0)
    h2 = jnp.maximum(h1 @ params["w2"].T + params["b2"], 0.0)
    return h2 @ params["w3"].T + params["b3"]


if __name__ == "__main__":
    key = jax.random.PRNGKey(0)
    k_x, k_p, k_xl, k_xh = jax.random.split(key, 4)

    batch, obs_dim, n_actions = 2, 8, 4    # e.g. LunarLander-like env
    x = jax.random.normal(k_x, (batch, obs_dim), dtype=jnp.float32)
    params = init_params(k_p, obs_dim, n_actions)

    # ---- Strict-accuracy f32 path (verifies exact PyTorch-semantics math). ----
    prepared_f32, n_act = prepare_params(params, compute_dtype=jnp.float32)
    out = jax.block_until_ready(qnetwork_forward(x, prepared_f32, n_act))
    ref = _reference(x, params)
    assert out.shape == (batch, n_actions)
    assert jnp.allclose(out, ref, atol=1e-5, rtol=1e-5)

    # Replay-style batch that is not a tile multiple (padding-aware tiling: 300 -> 304).
    xl = jax.random.normal(k_xl, (300, obs_dim), dtype=jnp.float32)
    out_l = jax.block_until_ready(qnetwork_forward(xl, prepared_f32, n_act))
    ref_l = _reference(xl, params)
    assert out_l.shape == (300, n_actions)
    assert jnp.allclose(out_l, ref_l, atol=1e-5, rtol=1e-5)

    # ---- Default fast path: bf16 MXU operands + bf16 writeback, f32 accumulation. ----
    prepared_bf16, _ = prepare_params(params)   # compute_dtype=bf16 default
    out_bf = jax.block_until_ready(qnetwork_forward(xl, prepared_bf16, n_act))
    assert out_bf.shape == (300, n_actions)
    assert jnp.allclose(out_bf, ref_l, atol=1e-1, rtol=1e-1)

    # Large batch: exercises multiple tiles (>=2 so both v7x TensorCores get work).
    xh = jax.random.normal(k_xh, (4096, obs_dim), dtype=jnp.float32)
    out_h = jax.block_until_ready(qnetwork_forward(xh, prepared_bf16, n_act))
    ref_h = _reference(xh, params)
    assert out_h.shape == (4096, n_actions)
    assert jnp.allclose(out_h, ref_h, atol=1e-1, rtol=1e-1)

    print("KERNEL_OK")
</pallas_src>

<mosaic_0001>
module attributes {stable_mosaic.version = 11 : i64} {
  func.func @qnet_kernel(%arg0: i32, %arg1: memref<8x8xf32, #tpu.memory_space<vmem>>, %arg2: memref<8x128xf32, #tpu.memory_space<vmem>>, %arg3: memref<128x128xf32, #tpu.memory_space<vmem>>, %arg4: memref<128x128xf32, #tpu.memory_space<vmem>>, %arg5: memref<8x128xf32, #tpu.memory_space<vmem>>, %arg6: memref<8x128xf32, #tpu.memory_space<vmem>>) attributes {dimension_semantics = [#tpu.dimension_semantics<parallel>], iteration_bounds = array<i64: 1>, scalar_prefetch = 0 : i64, scratch_operands = 0 : i64, tpu.core_type = #tpu.core_type<tc>, window_params = [{transform_indices = @transform_0, window_bounds = array<i64: 8, 8>}, {pipeline_mode = #tpu.pipeline_mode<synchronous>, transform_indices = @transform_1, window_bounds = array<i64: 8, 128>}, {pipeline_mode = #tpu.pipeline_mode<synchronous>, transform_indices = @transform_2, window_bounds = array<i64: 128, 128>}, {pipeline_mode = #tpu.pipeline_mode<synchronous>, transform_indices = @transform_3, window_bounds = array<i64: 128, 128>}, {pipeline_mode = #tpu.pipeline_mode<synchronous>, transform_indices = @transform_4, window_bounds = array<i64: 8, 128>}, {transform_indices = @transform_5, window_bounds = array<i64: 8, 128>}]} {
    %c0 = arith.constant 0 : index
    %c0_0 = arith.constant 0 : index
    %0 = vector.load %arg1[%c0, %c0_0] : memref<8x8xf32, #tpu.memory_space<vmem>>, vector<8x8xf32>
    %c0_1 = arith.constant 0 : index
    %c0_2 = arith.constant 0 : index
    %1 = vector.load %arg2[%c0_1, %c0_2] : memref<8x128xf32, #tpu.memory_space<vmem>>, vector<8x128xf32>
    %cst = arith.constant dense<0.000000e+00> : vector<8x128xf32>
    %2 = tpu.matmul %0, %1, %cst {dimension_numbers = #tpu.dot_dimension_numbers<[1], [0], [0], [1], [0, 0, 1, 1], [], []>} : vector<8x8xf32>, vector<8x128xf32>, vector<8x128xf32> -> vector<8x128xf32>
    %c0_3 = arith.constant 0 : index
    %c0_4 = arith.constant 0 : index
    %3 = vector.load %arg5[%c0_3, %c0_4] : memref<8x128xf32, #tpu.memory_space<vmem>>, vector<1x128xf32>
    %4 = vector.broadcast %3 : vector<1x128xf32> to vector<8x128xf32>
    %5 = arith.addf %2, %4 : vector<8x128xf32>
    %cst_5 = arith.constant 0.000000e+00 : f32
    %6 = vector.broadcast %cst_5 : f32 to vector<8x128xf32>
    %7 = arith.maximumf %5, %6 : vector<8x128xf32>
    %c0_6 = arith.constant 0 : index
    %c0_7 = arith.constant 0 : index
    %8 = vector.load %arg3[%c0_6, %c0_7] : memref<128x128xf32, #tpu.memory_space<vmem>>, vector<128x128xf32>
    %cst_8 = arith.constant dense<0.000000e+00> : vector<8x128xf32>
    %9 = tpu.matmul %7, %8, %cst_8 {dimension_numbers = #tpu.dot_dimension_numbers<[1], [0], [0], [1], [0, 0, 1, 1], [], []>} : vector<8x128xf32>, vector<128x128xf32>, vector<8x128xf32> -> vector<8x128xf32>
    %c1 = arith.constant 1 : index
    %c0_9 = arith.constant 0 : index
    %10 = vector.load %arg5[%c1, %c0_9] : memref<8x128xf32, #tpu.memory_space<vmem>>, vector<1x128xf32>
    %11 = vector.broadcast %10 : vector<1x128xf32> to vector<8x128xf32>
    %12 = arith.addf %9, %11 : vector<8x128xf32>
    %cst_10 = arith.constant 0.000000e+00 : f32
    %13 = vector.broadcast %cst_10 : f32 to vector<8x128xf32>
    %14 = arith.maximumf %12, %13 : vector<8x128xf32>
    %c0_11 = arith.constant 0 : index
    %c0_12 = arith.constant 0 : index
    %15 = vector.load %arg4[%c0_11, %c0_12] : memref<128x128xf32, #tpu.memory_space<vmem>>, vector<128x128xf32>
    %cst_13 = arith.constant dense<0.000000e+00> : vector<8x128xf32>
    %16 = tpu.matmul %14, %15, %cst_13 {dimension_numbers = #tpu.dot_dimension_numbers<[1], [0], [0], [1], [0, 0, 1, 1], [], []>} : vector<8x128xf32>, vector<128x128xf32>, vector<8x128xf32> -> vector<8x128xf32>
    %c2 = arith.constant 2 : index
    %c0_14 = arith.constant 0 : index
    %17 = vector.load %arg5[%c2, %c0_14] : memref<8x128xf32, #tpu.memory_space<vmem>>, vector<1x128xf32>
    %18 = vector.broadcast %17 : vector<1x128xf32> to vector<8x128xf32>
    %19 = arith.addf %16, %18 : vector<8x128xf32>
    %c0_15 = arith.constant 0 : index
    %c0_16 = arith.constant 0 : index
    %20 = vector.load %arg6[%c0_15, %c0_16] : memref<8x128xf32, #tpu.memory_space<vmem>>, vector<8x128xf32>
    tpu.vector_store %arg6[%c0_15, %c0_16], %19 {strides = array<i32>} : memref<8x128xf32, #tpu.memory_space<vmem>>, vector<8x128xf32>,
    return
  }
  func.func @transform_0(%arg0: i32) -> (i32, i32) {
    %c0_i32 = arith.constant 0 : i32
    %c0_i32_0 = arith.constant 0 : i32
    return %arg0, %c0_i32 : i32, i32
  }
  func.func @transform_1(%arg0: i32) -> (i32, i32) {
    %c0_i32 = arith.constant 0 : i32
    %c0_i32_0 = arith.constant 0 : i32
    %c0_i32_1 = arith.constant 0 : i32
    return %c0_i32, %c0_i32_0 : i32, i32
  }
  func.func @transform_2(%arg0: i32) -> (i32, i32) {
    %c0_i32 = arith.constant 0 : i32
    %c0_i32_0 = arith.constant 0 : i32
    %c0_i32_1 = arith.constant 0 : i32
    return %c0_i32, %c0_i32_0 : i32, i32
  }
  func.func @transform_3(%arg0: i32) -> (i32, i32) {
    %c0_i32 = arith.constant 0 : i32
    %c0_i32_0 = arith.constant 0 : i32
    %c0_i32_1 = arith.constant 0 : i32
    return %c0_i32, %c0_i32_0 : i32, i32
  }
  func.func @transform_4(%arg0: i32) -> (i32, i32) {
    %c0_i32 = arith.constant 0 : i32
    %c0_i32_0 = arith.constant 0 : i32
    %c0_i32_1 = arith.constant 0 : i32
    return %c0_i32, %c0_i32_0 : i32, i32
  }
  func.func @transform_5(%arg0: i32) -> (i32, i32) {
    %c0_i32 = arith.constant 0 : i32
    %c0_i32_0 = arith.constant 0 : i32
    return %arg0, %c0_i32 : i32, i32
  }
}

</mosaic_0001>

<llo_original>
// kernel: tpu_custom_call.1
$region0: #{tpu_custom_call.1}
  #allocation0 [shape = 'u32[]', space=smem, size = 0x4, offset = 0x4, fixed_abs, tag = 'smem constant byte address 0x4 - core index']
  #allocation1 [shape = 'u32[72,128]{1,0:T(1,128)}', space=vmem, size = 0x9000, scoped, tag = 'internal scratch']
  %s0 = inlined_call_operand.hbm [shape: f32[8,8], index: 0, kind: input, shape index: {}]
  %s1 = inlined_call_operand.hbm [shape: f32[8,128], index: 1, kind: input, shape index: {}]
  %s2 = inlined_call_operand.hbm [shape: f32[128,128], index: 2, kind: input, shape index: {}]
  %s3 = inlined_call_operand.hbm [shape: f32[128,128], index: 3, kind: input, shape index: {}]
  %s4 = inlined_call_operand.hbm [shape: f32[8,128], index: 4, kind: input, shape index: {}]
  %s5 = inlined_call_operand.hbm [shape: f32[8,128], index: 5, kind: output, shape index: {}]
  %s6 = sld [smem:[#allocation0]]
  $region50: #{tpu_custom_call.1} parent=0
    _
  %s8 = ssub.s32 1, %s6
  %s9 = scalar_select 0, %s8, %s6
  $region1: #{tpu_custom_call.1} parent=0
    #allocation2 [shape = 'u8[4096]{0}', space=vmem, size = 0x1000, scoped, tag = 'input window, operand 0, single buffered']
    #allocation3 [shape = 's32[1]{0}', space=sflag, size = 0x4, scoped, tag = 'scoped memory for tpu_custom_call.1']
    #allocation4 [shape = 's32[1]{0}', space=sflag, size = 0x4, scoped, tag = 'scoped memory for tpu_custom_call.1']
    #allocation5 [shape = 'u8[4096]{0}', space=vmem, size = 0x1000, scoped, tag = 'input window, operand 1, single buffered']
    #allocation6 [shape = 's32[1]{0}', space=sflag, size = 0x4, scoped, tag = 'scoped memory for tpu_custom_call.1']
    #allocation7 [shape = 'u8[65536]{0}', space=vmem, size = 0x10000, scoped, tag = 'input window, operand 2, single buffered']
    #allocation8 [shape = 'u8[65536]{0}', space=vmem, size = 0x10000, scoped, tag = 'input window, operand 3, single buffered']
    #allocation9 [shape = 's32[1]{0}', space=sflag, size = 0x4, scoped, tag = 'scoped memory for tpu_custom_call.1']
    #allocation10 [shape = 'u8[4096]{0}', space=vmem, size = 0x1000, scoped, tag = 'input window, operand 4, single buffered']
    #allocation11 [shape = 'u8[4096]{0}', space=vmem, size = 0x1000, scoped, tag = 'output window, operand 0, single buffered']
    %10 = vsyncpa [#allocation3], 0
    %11 = vsyncpa [#allocation6], 0
    %12 = vsyncpa [#allocation9], 0
    %13 = vsyncpa [#allocation4], 0
    // Predicated region
    $region2: #{tpu_custom_call.1} parent=1 // pred_check
      _
    $region3: #{tpu_custom_call.1} parent=1 // pred_check_branch
      %15 = sbr.rel (0) target = $region5
    $region4: #{tpu_custom_call.1} parent=1 // pred_region
      %17 = vsyncadd [#allocation3], 0
      %s19 = sshll.u32 %s0, 4
      %s20 = int_to_ptr.hbm [resolvable:$true] %s19
      %s21 = sshll.u32 [#allocation2], 4
      %s22 = int_to_ptr.vmem [resolvable:$true] %s21
      %24 = dma.hbm_to_vmem [thread:$0]  %s20, 128, %s22, [#allocation3]
    $region5: #{tpu_custom_call.1} parent=1 // pred_fallthru
      _
    // Predicated region
    $region6: #{tpu_custom_call.1} parent=1 // pred_check
      _
    $region7: #{tpu_custom_call.1} parent=1 // pred_check_branch
      %26 = sbr.rel (0) target = $region9
    $region8: #{tpu_custom_call.1} parent=1 // pred_region
      %28 = vsyncadd [#allocation6], 0
      %s30 = sshll.u32 %s1, 4
      %s31 = int_to_ptr.hbm [resolvable:$true] %s30
      %s32 = sshll.u32 [#allocation5], 4
      %s33 = int_to_ptr.vmem [resolvable:$true] %s32
      %35 = dma.hbm_to_vmem [thread:$0]  %s31, 128, %s33, [#allocation6]
    $region9: #{tpu_custom_call.1} parent=1 // pred_fallthru
      _
    // Predicated region
    $region10: #{tpu_custom_call.1} parent=1 // pred_check
      _
    $region11: #{tpu_custom_call.1} parent=1 // pred_check_branch
      %37 = sbr.rel (0) target = $region13
    $region12: #{tpu_custom_call.1} parent=1 // pred_region
      %39 = vsyncadd [#allocation6], 0
      %s40 = sshll.u32 %s2, 4
      %s41 = int_to_ptr.hbm [resolvable:$true] %s40
      %s42 = sshll.u32 [#allocation7], 4
      %s43 = int_to_ptr.vmem [resolvable:$true] %s42
      %48 = dma.hbm_to_vmem [thread:$0]  %s41, 2048, %s43, [#allocation6], 128, 128, 8
    $region13: #{tpu_custom_call.1} parent=1 // pred_fallthru
      _
    // Predicated region
    $region14: #{tpu_custom_call.1} parent=1 // pred_check
      _
    $region15: #{tpu_custom_call.1} parent=1 // pred_check_branch
      %50 = sbr.rel (0) target = $region17
    $region16: #{tpu_custom_call.1} parent=1 // pred_region
      %52 = vsyncadd [#allocation9], 0
      %s53 = sshll.u32 %s3, 4
      %s54 = int_to_ptr.hbm [resolvable:$true] %s53
      %s55 = sshll.u32 [#allocation8], 4
      %s56 = int_to_ptr.vmem [resolvable:$true] %s55
      %61 = dma.hbm_to_vmem [thread:$0]  %s54, 2048, %s56, [#allocation9], 128, 128, 8
    $region17: #{tpu_custom_call.1} parent=1 // pred_fallthru
      _
    // Predicated region
    $region18: #{tpu_custom_call.1} parent=1 // pred_check
      _
    $region19: #{tpu_custom_call.1} parent=1 // pred_check_branch
      %63 = sbr.rel (0) target = $region21
    $region20: #{tpu_custom_call.1} parent=1 // pred_region
      %65 = vsyncadd [#allocation9], 0
      %s67 = sshll.u32 %s4, 4
      %s68 = int_to_ptr.hbm [resolvable:$true] %s67
      %s69 = sshll.u32 [#allocation10], 4
      %s70 = int_to_ptr.vmem [resolvable:$true] %s69
      %72 = dma.hbm_to_vmem [thread:$0]  %s68, 128, %s70, [#allocation9]
    $region21: #{tpu_custom_call.1} parent=1 // pred_fallthru
      _
    // Predicated region
    $region22: #{tpu_custom_call.1} parent=1 // pred_check
      _
    $region23: #{tpu_custom_call.1} parent=1 // pred_check_branch
      %74 = sbr.rel (0) target = $region25
    $region24: #{tpu_custom_call.1} parent=1 // pred_region
      %76 = dma.done [#allocation3], 128
    $region25: #{tpu_custom_call.1} parent=1 // pred_fallthru
      _
    // Predicated region
    $region26: #{tpu_custom_call.1} parent=1 // pred_check
      _
    $region27: #{tpu_custom_call.1} parent=1 // pred_check_branch
      %78 = sbr.rel (0) target = $region29
    $region28: #{tpu_custom_call.1} parent=1 // pred_region
      %80 = dma.done [#allocation6], 128
    $region29: #{tpu_custom_call.1} parent=1 // pred_fallthru
      _
    // Predicated region
    $region30: #{tpu_custom_call.1} parent=1 // pred_check
      _
    $region31: #{tpu_custom_call.1} parent=1 // pred_check_branch
      %82 = sbr.rel (0) target = $region33
    $region32: #{tpu_custom_call.1} parent=1 // pred_region
      %84 = dma.done [#allocation6], 2048
    $region33: #{tpu_custom_call.1} parent=1 // pred_fallthru
      _
    // Predicated region
    $region34: #{tpu_custom_call.1} parent=1 // pred_check
      _
    $region35: #{tpu_custom_call.1} parent=1 // pred_check_branch
      %86 = sbr.rel (0) target = $region37
    $region36: #{tpu_custom_call.1} parent=1 // pred_region
      %88 = dma.done [#allocation9], 2048
    $region37: #{tpu_custom_call.1} parent=1 // pred_fallthru
      _
    // Predicated region
    $region38: #{tpu_custom_call.1} parent=1 // pred_check
      _
    $region39: #{tpu_custom_call.1} parent=1 // pred_check_branch
      %90 = sbr.rel (0) target = $region41
    $region40: #{tpu_custom_call.1} parent=1 // pred_region
      %92 = dma.done [#allocation9], 128
    $region41: #{tpu_custom_call.1} parent=1 // pred_fallthru
      _
    %v93 = vld [vmem:[#allocation2] sm:$0xff]
    %v94 = vld [vmem:[#allocation5] sm:$0xff]
    %v95 = vld [vmem:[#allocation10] sm:$0x1]
    %v96 = vperm.slane %v95, 0
    %vm97 = vcmask 64512
    %v99 = vsel %vm97, %v93, 0
    %101 = vmatpush.msra.mxu0 0.0
    %102 = vmatpush.msra.mxu0 0.0
    %103 = vmatpush.msra.mxu0 0.0
    %104 = vmatpush.msra.mxu0 0.0
    %105 = vmatpush.msra.mxu0 0.0
    %106 = vmatpush.msra.mxu0 0.0
    %107 = vmatpush.msra.mxu0 0.0
    %108 = vmatpush.msra.mxu0 0.0
    %109 = vmatpush.msra.mxu0 0.0
    %110 = vmatpush.msra.mxu0 0.0
    %111 = vmatpush.msra.mxu0 0.0
    %112 = vmatpush.msra.mxu0 0.0
    %113 = vmatpush.msra.mxu0 0.0
    %114 = vmatpush.msra.mxu0 0.0
    %115 = vmatpush.msra.mxu0 0.0
    %116 = vmatpush.msra.mxu0 %v94
    %117 = vmatmul.f32.gmra.mxu0 %v99
    %v118 = vpop.f32.mrf.mxu0
    %v119 = vadd.f32 %v96, %v118
    %120 = vdwg.mxu0
    %v121 = vmax.f32 %v119, 0.0
    %v122 = vld [vmem:[#allocation7] sm:$0xff]
    %v123 = vld [vmem:[#allocation7 + $0x8] sm:$0xff]
    %v124 = vld [vmem:[#allocation7 + $0x10] sm:$0xff]
    %v125 = vld [vmem:[#allocation7 + $0x18] sm:$0xff]
    %v126 = vld [vmem:[#allocation7 + $0x20] sm:$0xff]
    %v127 = vld [vmem:[#allocation7 + $0x28] sm:$0xff]
    %v128 = vld [vmem:[#allocation7 + $0x30] sm:$0xff]
    %v129 = vld [vmem:[#allocation7 + $0x38] sm:$0xff]
    %v130 = vld [vmem:[#allocation7 + $0x40] sm:$0xff]
    %v131 = vld [vmem:[#allocation7 + $0x48] sm:$0xff]
    %v132 = vld [vmem:[#allocation7 + $0x50] sm:$0xff]
    %v133 = vld [vmem:[#allocation7 + $0x58] sm:$0xff]
    %v134 = vld [vmem:[#allocation7 + $0x60] sm:$0xff]
    %v135 = vld [vmem:[#allocation7 + $0x68] sm:$0xff]
    %v136 = vld [vmem:[#allocation7 + $0x70] sm:$0xff]
    %v137 = vld [vmem:[#allocation7 + $0x78] sm:$0xff]
    %v138 = vld [vmem:[#allocation10 + $0x1] sm:$0x1]
    %v139 = vperm.slane %v138, 0
    %140 = vmatpush.msra.mxu0 %v137
    %141 = vmatpush.msra.mxu0 %v136
    %142 = vmatpush.msra.mxu0 %v135
    %143 = vmatpush.msra.mxu0 %v134
    %144 = vmatpush.msra.mxu0 %v133
    %145 = vmatpush.msra.mxu0 %v132
    %146 = vmatpush.msra.mxu0 %v131
    %147 = vmatpush.msra.mxu0 %v130
    %148 = vmatpush.msra.mxu0 %v129
    %149 = vmatpush.msra.mxu0 %v128
    %150 = vmatpush.msra.mxu0 %v127
    %151 = vmatpush.msra.mxu0 %v126
    %152 = vmatpush.msra.mxu0 %v125
    %153 = vmatpush.msra.mxu0 %v124
    %154 = vmatpush.msra.mxu0 %v123
    %155 = vmatpush.msra.mxu0 %v122
    %156 = vmatmul.f32.gmra.mxu0 %v121
    %v157 = vpop.f32.mrf.mxu0
    %v158 = vadd.f32 %v139, %v157
    %159 = vdwg.mxu0
    %v160 = vmax.f32 %v158, 0.0
    %v161 = vld [vmem:[#allocation8] sm:$0xff]
    %v162 = vld [vmem:[#allocation8 + $0x8] sm:$0xff]
    %v163 = vld [vmem:[#allocation8 + $0x10] sm:$0xff]
    %v164 = vld [vmem:[#allocation8 + $0x18] sm:$0xff]
    %v165 = vld [vmem:[#allocation8 + $0x20] sm:$0xff]
    %v166 = vld [vmem:[#allocation8 + $0x28] sm:$0xff]
    %v167 = vld [vmem:[#allocation8 + $0x30] sm:$0xff]
    %v168 = vld [vmem:[#allocation8 + $0x38] sm:$0xff]
    %v169 = vld [vmem:[#allocation8 + $0x40] sm:$0xff]
    %v170 = vld [vmem:[#allocation8 + $0x48] sm:$0xff]
    %v171 = vld [vmem:[#allocation8 + $0x50] sm:$0xff]
    %v172 = vld [vmem:[#allocation8 + $0x58] sm:$0xff]
    %v173 = vld [vmem:[#allocation8 + $0x60] sm:$0xff]
    %v174 = vld [vmem:[#allocation8 + $0x68] sm:$0xff]
    %v175 = vld [vmem:[#allocation8 + $0x70] sm:$0xff]
    %v176 = vld [vmem:[#allocation8 + $0x78] sm:$0xff]
    %v177 = vld [vmem:[#allocation10 + $0x2] sm:$0x1]
    %v178 = vperm.slane %v177, 0
    %179 = vmatpush.msra.mxu0 %v176
    %180 = vmatpush.msra.mxu0 %v175
    %181 = vmatpush.msra.mxu0 %v174
    %182 = vmatpush.msra.mxu0 %v173
    %183 = vmatpush.msra.mxu0 %v172
    %184 = vmatpush.msra.mxu0 %v171
    %185 = vmatpush.msra.mxu0 %v170
    %186 = vmatpush.msra.mxu0 %v169
    %187 = vmatpush.msra.mxu0 %v168
    %188 = vmatpush.msra.mxu0 %v167
    %189 = vmatpush.msra.mxu0 %v166
    %190 = vmatpush.msra.mxu0 %v165
    %191 = vmatpush.msra.mxu0 %v164
    %192 = vmatpush.msra.mxu0 %v163
    %193 = vmatpush.msra.mxu0 %v162
    %194 = vmatpush.msra.mxu0 %v161
    %195 = vmatmul.f32.gmra.mxu0 %v160
    %v196 = vpop.f32.mrf.mxu0
    %v197 = vadd.f32 %v178, %v196
    %198 = vdwg.mxu0
    %199 = vst [vmem:[#allocation11] sm:$0xff] %v197
    // Predicated region
    $region42: #{tpu_custom_call.1} parent=1 // pred_check
      _
    $region43: #{tpu_custom_call.1} parent=1 // pred_check_branch
      %201 = sbr.rel (0) target = $region45
    $region44: #{tpu_custom_call.1} parent=1 // pred_region
      %203 = vsyncadd [#allocation4], 0
      %s205 = sshll.u32 [#allocation11], 4
      %s206 = int_to_ptr.vmem [resolvable:$true] %s205
      %s207 = sshll.u32 %s5, 4
      %s208 = int_to_ptr.hbm [resolvable:$true] %s207
      %210 = dma.vmem_to_hbm [thread:$0]  %s206, 128, %s208, [#allocation4]
    $region45: #{tpu_custom_call.1} parent=1 // pred_fallthru
      _
    // Predicated region
    $region46: #{tpu_custom_call.1} parent=1 // pred_check
      _
    $region47: #{tpu_custom_call.1} parent=1 // pred_check_branch
      %212 = sbr.rel (0) target = $region49
    $region48: #{tpu_custom_call.1} parent=1 // pred_region
      %214 = dma.done [#allocation4], 128
    $region49: #{tpu_custom_call.1} parent=1 // pred_fallthru
      _
    %215 = vsyncpa [#allocation3], 1
    %216 = vsyncpa [#allocation6], 1
    %217 = vsyncpa [#allocation9], 1
    %218 = vsyncpa [#allocation4], 1

</llo_original>
